<compile_context>
chip_gen: v7x
topology: tpu7x:2x2x1
jax: 0.10.0
libtpu: 0.0.40
codegen_flags: <defaults>
</compile_context>

<pallas_src>
import functools

import numpy as np

import jax
import jax.numpy as jnp
from jax import lax
from jax.experimental import pallas as pl
from jax.experimental.pallas import tpu as pltpu


def _vmem_spec():
    # Whole (tiny) array resident in VMEM.
    return pl.BlockSpec(memory_space=pltpu.MemorySpace.VMEM)


def _linear_sti_kernel(x_ref, y_ref, y_out_ref, at_ref, *, d, m, l):
    """Fused forward: Gram+ridge -> Gauss-Jordan solve -> AR prediction loop."""
    n_steps = l - m
    w = m - 1
    x_head = x_ref[:, :w]                 # (d, w)
    x_last = x_ref[:, w:m]                # (d, 1)

    # ---------------- XX = x_head @ x_head^T + I (VPU only) ----------------
    ri = lax.broadcasted_iota(jnp.int32, (d, d), 0)
    ci = lax.broadcasted_iota(jnp.int32, (d, d), 1)
    xx = jnp.zeros((d, d), jnp.float32)
    for j in range(d):                    # static & tiny -> unrolled
        # column j of the Gram: sum_k x_head[:, k] * x_head[j, k]
        col_j = jnp.sum(x_head * x_head[j:j + 1, :], axis=1, keepdims=True)
        xx = jnp.where(ci == j, col_j, xx)
    # ridge: add 1.0 on the diagonal only (no explicit eye materialization)
    xx = jnp.where(ri == ci, xx + 1.0, xx)

    # -------- Solve XX @ Z = x_head  (Z = XX^{-1} x_head = P^T) ------------
    # Gauss-Jordan without pivoting: XX is a ridged SPD Gram, pivots >= 1.
    lhs = xx                              # (d, d)
    rhs = x_head                          # (d, w)
    rid_r = lax.broadcasted_iota(jnp.int32, (d, w), 0)
    for k in range(d):                    # static -> unrolled
        inv_piv = 1.0 / lhs[k:k + 1, k:k + 1]            # (1, 1)
        lhs_row = lhs[k:k + 1, :] * inv_piv              # (1, d)
        rhs_row = rhs[k:k + 1, :] * inv_piv              # (1, w)
        col_k = lhs[:, k:k + 1]                          # (d, 1)
        lhs = lhs - col_k * lhs_row                      # eliminate column k
        rhs = rhs - col_k * rhs_row
        lhs = jnp.where(ri == k, lhs_row, lhs)           # restore pivot row
        rhs = jnp.where(rid_r == k, rhs_row, rhs)
    z = rhs                                              # (d, w) == P^T

    # ---------------- Autoregressive recursion (inherently sequential) -----
    # y[m+i] = (y[i+1:m+i] @ P) @ x[:,-1] = y[i+1:m+i] @ c, with c = P @ x[:,-1].
    c = jnp.sum(z * x_last, axis=0, keepdims=True)       # (1, w)

    y_vec = y_ref[...]                                   # (1, l), stays in vregs
    lane = lax.broadcasted_iota(jnp.int32, (1, l), 1)
    for i in range(n_steps):                             # static -> unrolled
        win = y_vec[:, i + 1:i + 1 + w]                  # (1, w) sliding window
        pred = jnp.sum(win * c, axis=1, keepdims=True)   # (1, 1) scalar y[m+i]
        y_vec = jnp.where(lane == (m + i), pred, y_vec)  # lane-masked insert
    y_out_ref[...] = y_vec                               # single store

    # ---------------- A^T[:, i] = Z @ y[i+1 : m+i]  (vectorized) -----------
    # A never feeds back, so compute it after y is fully known: accumulate one
    # outer product per window tap j (d x n_steps each), all on the VPU.
    at = jnp.zeros((d, n_steps), jnp.float32)
    for j in range(w):                                   # static -> unrolled
        wrow = y_vec[:, 1 + j:1 + j + n_steps]           # (1, n_steps): y[i+1+j]
        at = at + z[:, j:j + 1] * wrow
    at_ref[...] = at


# ----------------- Forward (matches linear_sti.forward) ---------------------
@jax.jit
def linear_sti_forward(x, y):
    d, m = x.shape
    l = y.shape[0]
    n_steps = l - m

    if n_steps <= 0:  # nothing to predict; A has no rows to fill
        return y.astype(jnp.float32), jnp.zeros((max(n_steps, 0), d), jnp.float32)

    x = x.astype(jnp.float32)
    y_row = y.astype(jnp.float32).reshape(1, l)

    kernel = functools.partial(_linear_sti_kernel, d=d, m=m, l=l)
    y_out_row, a_t = pl.pallas_call(
        kernel,
        out_shape=(
            jax.ShapeDtypeStruct((1, l), jnp.float32),        # y   (time on lanes)
            jax.ShapeDtypeStruct((d, n_steps), jnp.float32),  # A^T (long dim last)
        ),
        in_specs=[_vmem_spec(), _vmem_spec()],
        out_specs=(_vmem_spec(), _vmem_spec()),
    )(x, y_row)
    # Layout plumbing only: present (y, A) exactly as the PyTorch module does.
    return y_out_row.reshape(l), a_t.T


# ----------------- Pure numpy reference (mirrors the torch code) ------------
def reference_forward(x, y, out_size):
    x = np.asarray(x, dtype=np.float64)
    y = np.array(y, dtype=np.float64, copy=True)
    d, m = x.shape
    XX = x[:, :-1] @ x[:, :-1].T + np.eye(d)
    XX_inv = np.linalg.inv(XX)
    l = len(y)
    P = x[:, :-1].T @ XX_inv
    A = np.zeros((out_size, d))
    for i in range(l - m):
        A_temp = y[i + 1:m + i] @ P
        A[i, :] = A_temp
        y[m + i] = A_temp @ x[:, -1]
    return y, A


if __name__ == "__main__":
    # in_feature = d, out_size = l - m  (the rows of A that the loop fills)
    d, m, l = 4, 8, 16
    key = jax.random.PRNGKey(0)
    kx, ky = jax.random.split(key)
    x = jax.random.normal(kx, (d, m), dtype=jnp.float32)
    y_obs = jax.random.normal(ky, (m,), dtype=jnp.float32)
    # Entries y[m:] are placeholders that the forward pass overwrites,
    # exactly like the in-place writes in the PyTorch module.
    y = jnp.concatenate([y_obs, jnp.zeros((l - m,), jnp.float32)])

    y_out, a_out = linear_sti_forward(x, y)
    jax.block_until_ready((y_out, a_out))

    y_ref, a_ref = reference_forward(np.asarray(x), np.asarray(y), l - m)
    assert np.allclose(np.asarray(y_out), y_ref, rtol=2e-2, atol=2e-2), "y mismatch"
    assert np.allclose(np.asarray(a_out), a_ref, rtol=2e-2, atol=2e-2), "A mismatch"
    print("KERNEL_OK")
</pallas_src>

<mosaic_0001>
module attributes {stable_mosaic.version = 11 : i64} {
  func.func @_linear_sti_kernel(%arg0: memref<4x8xf32, #tpu.memory_space<vmem>>, %arg1: memref<1x16xf32, #tpu.memory_space<vmem>>, %arg2: memref<1x16xf32, #tpu.memory_space<vmem>>, %arg3: memref<4x8xf32, #tpu.memory_space<vmem>>) attributes {dimension_semantics = [], scalar_prefetch = 0 : i64, scratch_operands = 0 : i64, tpu.core_type = #tpu.core_type<tc>} {
    %c0 = arith.constant 0 : index
    %c0_0 = arith.constant 0 : index
    %0 = vector.load %arg0[%c0, %c0_0] : memref<4x8xf32, #tpu.memory_space<vmem>>, vector<4x7xf32>
    %c0_1 = arith.constant 0 : index
    %c7 = arith.constant 7 : index
    %1 = vector.load %arg0[%c0_1, %c7] : memref<4x8xf32, #tpu.memory_space<vmem>>, vector<4x1xf32>
    %2 = tpu.iota {dimensions = array<i32: 0>} : vector<4x4xi32>
    %3 = tpu.iota {dimensions = array<i32: 1>} : vector<4x4xi32>
    %cst = arith.constant 0.000000e+00 : f32
    %4 = vector.broadcast %cst : f32 to vector<4x4xf32>
    %5 = vector.extract_strided_slice %0 {offsets = [0, 0], sizes = [1, 7], strides = [1, 1]} : vector<4x7xf32> to vector<1x7xf32>
    %6 = vector.broadcast %5 : vector<1x7xf32> to vector<4x7xf32>
    %7 = arith.mulf %0, %6 : vector<4x7xf32>
    %cst_2 = arith.constant dense<0.000000e+00> : vector<4xf32>
    %8 = vector.multi_reduction <add>, %7, %cst_2 [1] : vector<4x7xf32> to vector<4xf32>
    %9 = vector.shape_cast %8 : vector<4xf32> to vector<4x1xf32>
    %c0_i32 = arith.constant 0 : i32
    %10 = vector.broadcast %c0_i32 : i32 to vector<4x4xi32>
    %11 = arith.cmpi eq, %3, %10 : vector<4x4xi32>
    %12 = vector.shape_cast %9 : vector<4x1xf32> to vector<4x1xf32>
    %13 = vector.broadcast %12 : vector<4x1xf32> to vector<4x4xf32>
    %14 = arith.select %11, %13, %4 : vector<4x4xi1>, vector<4x4xf32>
    %15 = vector.extract_strided_slice %0 {offsets = [1, 0], sizes = [1, 7], strides = [1, 1]} : vector<4x7xf32> to vector<1x7xf32>
    %16 = vector.broadcast %15 : vector<1x7xf32> to vector<4x7xf32>
    %17 = arith.mulf %0, %16 : vector<4x7xf32>
    %cst_3 = arith.constant dense<0.000000e+00> : vector<4xf32>
    %18 = vector.multi_reduction <add>, %17, %cst_3 [1] : vector<4x7xf32> to vector<4xf32>
    %19 = vector.shape_cast %18 : vector<4xf32> to vector<4x1xf32>
    %c1_i32 = arith.constant 1 : i32
    %20 = vector.broadcast %c1_i32 : i32 to vector<4x4xi32>
    %21 = arith.cmpi eq, %3, %20 : vector<4x4xi32>
    %22 = vector.shape_cast %19 : vector<4x1xf32> to vector<4x1xf32>
    %23 = vector.broadcast %22 : vector<4x1xf32> to vector<4x4xf32>
    %24 = arith.select %21, %23, %14 : vector<4x4xi1>, vector<4x4xf32>
    %25 = vector.extract_strided_slice %0 {offsets = [2, 0], sizes = [1, 7], strides = [1, 1]} : vector<4x7xf32> to vector<1x7xf32>
    %26 = vector.broadcast %25 : vector<1x7xf32> to vector<4x7xf32>
    %27 = arith.mulf %0, %26 : vector<4x7xf32>
    %cst_4 = arith.constant dense<0.000000e+00> : vector<4xf32>
    %28 = vector.multi_reduction <add>, %27, %cst_4 [1] : vector<4x7xf32> to vector<4xf32>
    %29 = vector.shape_cast %28 : vector<4xf32> to vector<4x1xf32>
    %c2_i32 = arith.constant 2 : i32
    %30 = vector.broadcast %c2_i32 : i32 to vector<4x4xi32>
    %31 = arith.cmpi eq, %3, %30 : vector<4x4xi32>
    %32 = vector.shape_cast %29 : vector<4x1xf32> to vector<4x1xf32>
    %33 = vector.broadcast %32 : vector<4x1xf32> to vector<4x4xf32>
    %34 = arith.select %31, %33, %24 : vector<4x4xi1>, vector<4x4xf32>
    %35 = vector.extract_strided_slice %0 {offsets = [3, 0], sizes = [1, 7], strides = [1, 1]} : vector<4x7xf32> to vector<1x7xf32>
    %36 = vector.broadcast %35 : vector<1x7xf32> to vector<4x7xf32>
    %37 = arith.mulf %0, %36 : vector<4x7xf32>
    %cst_5 = arith.constant dense<0.000000e+00> : vector<4xf32>
    %38 = vector.multi_reduction <add>, %37, %cst_5 [1] : vector<4x7xf32> to vector<4xf32>
    %39 = vector.shape_cast %38 : vector<4xf32> to vector<4x1xf32>
    %c3_i32 = arith.constant 3 : i32
    %40 = vector.broadcast %c3_i32 : i32 to vector<4x4xi32>
    %41 = arith.cmpi eq, %3, %40 : vector<4x4xi32>
    %42 = vector.shape_cast %39 : vector<4x1xf32> to vector<4x1xf32>
    %43 = vector.broadcast %42 : vector<4x1xf32> to vector<4x4xf32>
    %44 = arith.select %41, %43, %34 : vector<4x4xi1>, vector<4x4xf32>
    %45 = arith.cmpi eq, %2, %3 : vector<4x4xi32>
    %cst_6 = arith.constant 1.000000e+00 : f32
    %46 = vector.broadcast %cst_6 : f32 to vector<4x4xf32>
    %47 = arith.addf %44, %46 : vector<4x4xf32>
    %48 = arith.select %45, %47, %44 : vector<4x4xi1>, vector<4x4xf32>
    %49 = tpu.iota {dimensions = array<i32: 0>} : vector<4x7xi32>
    %50 = vector.extract_strided_slice %48 {offsets = [0, 0], sizes = [1, 1], strides = [1, 1]} : vector<4x4xf32> to vector<1x1xf32>
    %cst_7 = arith.constant 1.000000e+00 : f32
    %51 = vector.broadcast %cst_7 : f32 to vector<1x1xf32>
    %52 = arith.divf %51, %50 : vector<1x1xf32>
    %53 = vector.extract_strided_slice %48 {offsets = [0, 0], sizes = [1, 4], strides = [1, 1]} : vector<4x4xf32> to vector<1x4xf32>
    %54 = vector.broadcast %52 : vector<1x1xf32> to vector<1x4xf32>
    %55 = arith.mulf %53, %54 : vector<1x4xf32>
    %56 = vector.extract_strided_slice %0 {offsets = [0, 0], sizes = [1, 7], strides = [1, 1]} : vector<4x7xf32> to vector<1x7xf32>
    %57 = vector.broadcast %52 : vector<1x1xf32> to vector<1x7xf32>
    %58 = arith.mulf %56, %57 : vector<1x7xf32>
    %59 = vector.extract_strided_slice %48 {offsets = [0, 0], sizes = [4, 1], strides = [1, 1]} : vector<4x4xf32> to vector<4x1xf32>
    %60 = vector.broadcast %59 : vector<4x1xf32> to vector<4x4xf32>
    %61 = vector.broadcast %55 : vector<1x4xf32> to vector<4x4xf32>
    %62 = arith.mulf %60, %61 : vector<4x4xf32>
    %63 = arith.subf %48, %62 : vector<4x4xf32>
    %64 = vector.broadcast %59 : vector<4x1xf32> to vector<4x7xf32>
    %65 = vector.broadcast %58 : vector<1x7xf32> to vector<4x7xf32>
    %66 = arith.mulf %64, %65 : vector<4x7xf32>
    %67 = arith.subf %0, %66 : vector<4x7xf32>
    %c0_i32_8 = arith.constant 0 : i32
    %68 = vector.broadcast %c0_i32_8 : i32 to vector<4x4xi32>
    %69 = arith.cmpi eq, %2, %68 : vector<4x4xi32>
    %70 = vector.shape_cast %55 : vector<1x4xf32> to vector<1x4xf32>
    %71 = vector.broadcast %70 : vector<1x4xf32> to vector<4x4xf32>
    %72 = arith.select %69, %71, %63 : vector<4x4xi1>, vector<4x4xf32>
    %c0_i32_9 = arith.constant 0 : i32
    %73 = vector.broadcast %c0_i32_9 : i32 to vector<4x7xi32>
    %74 = arith.cmpi eq, %49, %73 : vector<4x7xi32>
    %75 = vector.shape_cast %58 : vector<1x7xf32> to vector<1x7xf32>
    %76 = vector.broadcast %75 : vector<1x7xf32> to vector<4x7xf32>
    %77 = arith.select %74, %76, %67 : vector<4x7xi1>, vector<4x7xf32>
    %78 = vector.extract_strided_slice %72 {offsets = [1, 1], sizes = [1, 1], strides = [1, 1]} : vector<4x4xf32> to vector<1x1xf32>
    %cst_10 = arith.constant 1.000000e+00 : f32
    %79 = vector.broadcast %cst_10 : f32 to vector<1x1xf32>
    %80 = arith.divf %79, %78 : vector<1x1xf32>
    %81 = vector.extract_strided_slice %72 {offsets = [1, 0], sizes = [1, 4], strides = [1, 1]} : vector<4x4xf32> to vector<1x4xf32>
    %82 = vector.broadcast %80 : vector<1x1xf32> to vector<1x4xf32>
    %83 = arith.mulf %81, %82 : vector<1x4xf32>
    %84 = vector.extract_strided_slice %77 {offsets = [1, 0], sizes = [1, 7], strides = [1, 1]} : vector<4x7xf32> to vector<1x7xf32>
    %85 = vector.broadcast %80 : vector<1x1xf32> to vector<1x7xf32>
    %86 = arith.mulf %84, %85 : vector<1x7xf32>
    %87 = vector.extract_strided_slice %72 {offsets = [0, 1], sizes = [4, 1], strides = [1, 1]} : vector<4x4xf32> to vector<4x1xf32>
    %88 = vector.broadcast %87 : vector<4x1xf32> to vector<4x4xf32>
    %89 = vector.broadcast %83 : vector<1x4xf32> to vector<4x4xf32>
    %90 = arith.mulf %88, %89 : vector<4x4xf32>
    %91 = arith.subf %72, %90 : vector<4x4xf32>
    %92 = vector.broadcast %87 : vector<4x1xf32> to vector<4x7xf32>
    %93 = vector.broadcast %86 : vector<1x7xf32> to vector<4x7xf32>
    %94 = arith.mulf %92, %93 : vector<4x7xf32>
    %95 = arith.subf %77, %94 : vector<4x7xf32>
    %c1_i32_11 = arith.constant 1 : i32
    %96 = vector.broadcast %c1_i32_11 : i32 to vector<4x4xi32>
    %97 = arith.cmpi eq, %2, %96 : vector<4x4xi32>
    %98 = vector.shape_cast %83 : vector<1x4xf32> to vector<1x4xf32>
    %99 = vector.broadcast %98 : vector<1x4xf32> to vector<4x4xf32>
    %100 = arith.select %97, %99, %91 : vector<4x4xi1>, vector<4x4xf32>
    %c1_i32_12 = arith.constant 1 : i32
    %101 = vector.broadcast %c1_i32_12 : i32 to vector<4x7xi32>
    %102 = arith.cmpi eq, %49, %101 : vector<4x7xi32>
    %103 = vector.shape_cast %86 : vector<1x7xf32> to vector<1x7xf32>
    %104 = vector.broadcast %103 : vector<1x7xf32> to vector<4x7xf32>
    %105 = arith.select %102, %104, %95 : vector<4x7xi1>, vector<4x7xf32>
    %106 = vector.extract_strided_slice %100 {offsets = [2, 2], sizes = [1, 1], strides = [1, 1]} : vector<4x4xf32> to vector<1x1xf32>
    %cst_13 = arith.constant 1.000000e+00 : f32
    %107 = vector.broadcast %cst_13 : f32 to vector<1x1xf32>
    %108 = arith.divf %107, %106 : vector<1x1xf32>
    %109 = vector.extract_strided_slice %100 {offsets = [2, 0], sizes = [1, 4], strides = [1, 1]} : vector<4x4xf32> to vector<1x4xf32>
    %110 = vector.broadcast %108 : vector<1x1xf32> to vector<1x4xf32>
    %111 = arith.mulf %109, %110 : vector<1x4xf32>
    %112 = vector.extract_strided_slice %105 {offsets = [2, 0], sizes = [1, 7], strides = [1, 1]} : vector<4x7xf32> to vector<1x7xf32>
    %113 = vector.broadcast %108 : vector<1x1xf32> to vector<1x7xf32>
    %114 = arith.mulf %112, %113 : vector<1x7xf32>
    %115 = vector.extract_strided_slice %100 {offsets = [0, 2], sizes = [4, 1], strides = [1, 1]} : vector<4x4xf32> to vector<4x1xf32>
    %116 = vector.broadcast %115 : vector<4x1xf32> to vector<4x4xf32>
    %117 = vector.broadcast %111 : vector<1x4xf32> to vector<4x4xf32>
    %118 = arith.mulf %116, %117 : vector<4x4xf32>
    %119 = arith.subf %100, %118 : vector<4x4xf32>
    %120 = vector.broadcast %115 : vector<4x1xf32> to vector<4x7xf32>
    %121 = vector.broadcast %114 : vector<1x7xf32> to vector<4x7xf32>
    %122 = arith.mulf %120, %121 : vector<4x7xf32>
    %123 = arith.subf %105, %122 : vector<4x7xf32>
    %c2_i32_14 = arith.constant 2 : i32
    %124 = vector.broadcast %c2_i32_14 : i32 to vector<4x4xi32>
    %125 = arith.cmpi eq, %2, %124 : vector<4x4xi32>
    %126 = vector.shape_cast %111 : vector<1x4xf32> to vector<1x4xf32>
    %127 = vector.broadcast %126 : vector<1x4xf32> to vector<4x4xf32>
    %128 = arith.select %125, %127, %119 : vector<4x4xi1>, vector<4x4xf32>
    %c2_i32_15 = arith.constant 2 : i32
    %129 = vector.broadcast %c2_i32_15 : i32 to vector<4x7xi32>
    %130 = arith.cmpi eq, %49, %129 : vector<4x7xi32>
    %131 = vector.shape_cast %114 : vector<1x7xf32> to vector<1x7xf32>
    %132 = vector.broadcast %131 : vector<1x7xf32> to vector<4x7xf32>
    %133 = arith.select %130, %132, %123 : vector<4x7xi1>, vector<4x7xf32>
    %134 = vector.extract_strided_slice %128 {offsets = [3, 3], sizes = [1, 1], strides = [1, 1]} : vector<4x4xf32> to vector<1x1xf32>
    %cst_16 = arith.constant 1.000000e+00 : f32
    %135 = vector.broadcast %cst_16 : f32 to vector<1x1xf32>
    %136 = arith.divf %135, %134 : vector<1x1xf32>
    %137 = vector.extract_strided_slice %133 {offsets = [3, 0], sizes = [1, 7], strides = [1, 1]} : vector<4x7xf32> to vector<1x7xf32>
    %138 = vector.broadcast %136 : vector<1x1xf32> to vector<1x7xf32>
    %139 = arith.mulf %137, %138 : vector<1x7xf32>
    %140 = vector.extract_strided_slice %128 {offsets = [0, 3], sizes = [4, 1], strides = [1, 1]} : vector<4x4xf32> to vector<4x1xf32>
    %141 = vector.broadcast %140 : vector<4x1xf32> to vector<4x7xf32>
    %142 = vector.broadcast %139 : vector<1x7xf32> to vector<4x7xf32>
    %143 = arith.mulf %141, %142 : vector<4x7xf32>
    %144 = arith.subf %133, %143 : vector<4x7xf32>
    %c3_i32_17 = arith.constant 3 : i32
    %145 = vector.broadcast %c3_i32_17 : i32 to vector<4x7xi32>
    %146 = arith.cmpi eq, %49, %145 : vector<4x7xi32>
    %147 = vector.shape_cast %139 : vector<1x7xf32> to vector<1x7xf32>
    %148 = vector.broadcast %147 : vector<1x7xf32> to vector<4x7xf32>
    %149 = arith.select %146, %148, %144 : vector<4x7xi1>, vector<4x7xf32>
    %150 = vector.broadcast %1 : vector<4x1xf32> to vector<4x7xf32>
    %151 = arith.mulf %149, %150 : vector<4x7xf32>
    %cst_18 = arith.constant dense<0.000000e+00> : vector<7xf32>
    %152 = vector.multi_reduction <add>, %151, %cst_18 [0] : vector<4x7xf32> to vector<7xf32>
    %153 = vector.shape_cast %152 : vector<7xf32> to vector<1x7xf32>
    %c0_19 = arith.constant 0 : index
    %c0_20 = arith.constant 0 : index
    %154 = vector.load %arg1[%c0_19, %c0_20] : memref<1x16xf32, #tpu.memory_space<vmem>>, vector<1x16xf32>
    %155 = tpu.iota {dimensions = array<i32: 1>} : vector<1x16xi32>
    %156 = vector.extract_strided_slice %154 {offsets = [0, 1], sizes = [1, 7], strides = [1, 1]} : vector<1x16xf32> to vector<1x7xf32>
    %157 = arith.mulf %156, %153 : vector<1x7xf32>
    %cst_21 = arith.constant dense<0.000000e+00> : vector<1xf32>
    %158 = vector.multi_reduction <add>, %157, %cst_21 [1] : vector<1x7xf32> to vector<1xf32>
    %159 = vector.shape_cast %158 : vector<1xf32> to vector<1x1xf32>
    %c8_i32 = arith.constant 8 : i32
    %160 = vector.broadcast %c8_i32 : i32 to vector<1x16xi32>
    %161 = arith.cmpi eq, %155, %160 : vector<1x16xi32>
    %162 = vector.shape_cast %159 : vector<1x1xf32> to vector<1x1xf32>
    %163 = vector.broadcast %162 : vector<1x1xf32> to vector<1x16xf32>
    %164 = arith.select %161, %163, %154 : vector<1x16xi1>, vector<1x16xf32>
    %165 = vector.extract_strided_slice %164 {offsets = [0, 2], sizes = [1, 7], strides = [1, 1]} : vector<1x16xf32> to vector<1x7xf32>
    %166 = arith.mulf %165, %153 : vector<1x7xf32>
    %cst_22 = arith.constant dense<0.000000e+00> : vector<1xf32>
    %167 = vector.multi_reduction <add>, %166, %cst_22 [1] : vector<1x7xf32> to vector<1xf32>
    %168 = vector.shape_cast %167 : vector<1xf32> to vector<1x1xf32>
    %c9_i32 = arith.constant 9 : i32
    %169 = vector.broadcast %c9_i32 : i32 to vector<1x16xi32>
    %170 = arith.cmpi eq, %155, %169 : vector<1x16xi32>
    %171 = vector.shape_cast %168 : vector<1x1xf32> to vector<1x1xf32>
    %172 = vector.broadcast %171 : vector<1x1xf32> to vector<1x16xf32>
    %173 = arith.select %170, %172, %164 : vector<1x16xi1>, vector<1x16xf32>
    %174 = vector.extract_strided_slice %173 {offsets = [0, 3], sizes = [1, 7], strides = [1, 1]} : vector<1x16xf32> to vector<1x7xf32>
    %175 = arith.mulf %174, %153 : vector<1x7xf32>
    %cst_23 = arith.constant dense<0.000000e+00> : vector<1xf32>
    %176 = vector.multi_reduction <add>, %175, %cst_23 [1] : vector<1x7xf32> to vector<1xf32>
    %177 = vector.shape_cast %176 : vector<1xf32> to vector<1x1xf32>
    %c10_i32 = arith.constant 10 : i32
    %178 = vector.broadcast %c10_i32 : i32 to vector<1x16xi32>
    %179 = arith.cmpi eq, %155, %178 : vector<1x16xi32>
    %180 = vector.shape_cast %177 : vector<1x1xf32> to vector<1x1xf32>
    %181 = vector.broadcast %180 : vector<1x1xf32> to vector<1x16xf32>
    %182 = arith.select %179, %181, %173 : vector<1x16xi1>, vector<1x16xf32>
    %183 = vector.extract_strided_slice %182 {offsets = [0, 4], sizes = [1, 7], strides = [1, 1]} : vector<1x16xf32> to vector<1x7xf32>
    %184 = arith.mulf %183, %153 : vector<1x7xf32>
    %cst_24 = arith.constant dense<0.000000e+00> : vector<1xf32>
    %185 = vector.multi_reduction <add>, %184, %cst_24 [1] : vector<1x7xf32> to vector<1xf32>
    %186 = vector.shape_cast %185 : vector<1xf32> to vector<1x1xf32>
    %c11_i32 = arith.constant 11 : i32
    %187 = vector.broadcast %c11_i32 : i32 to vector<1x16xi32>
    %188 = arith.cmpi eq, %155, %187 : vector<1x16xi32>
    %189 = vector.shape_cast %186 : vector<1x1xf32> to vector<1x1xf32>
    %190 = vector.broadcast %189 : vector<1x1xf32> to vector<1x16xf32>
    %191 = arith.select %188, %190, %182 : vector<1x16xi1>, vector<1x16xf32>
    %192 = vector.extract_strided_slice %191 {offsets = [0, 5], sizes = [1, 7], strides = [1, 1]} : vector<1x16xf32> to vector<1x7xf32>
    %193 = arith.mulf %192, %153 : vector<1x7xf32>
    %cst_25 = arith.constant dense<0.000000e+00> : vector<1xf32>
    %194 = vector.multi_reduction <add>, %193, %cst_25 [1] : vector<1x7xf32> to vector<1xf32>
    %195 = vector.shape_cast %194 : vector<1xf32> to vector<1x1xf32>
    %c12_i32 = arith.constant 12 : i32
    %196 = vector.broadcast %c12_i32 : i32 to vector<1x16xi32>
    %197 = arith.cmpi eq, %155, %196 : vector<1x16xi32>
    %198 = vector.shape_cast %195 : vector<1x1xf32> to vector<1x1xf32>
    %199 = vector.broadcast %198 : vector<1x1xf32> to vector<1x16xf32>
    %200 = arith.select %197, %199, %191 : vector<1x16xi1>, vector<1x16xf32>
    %201 = vector.extract_strided_slice %200 {offsets = [0, 6], sizes = [1, 7], strides = [1, 1]} : vector<1x16xf32> to vector<1x7xf32>
    %202 = arith.mulf %201, %153 : vector<1x7xf32>
    %cst_26 = arith.constant dense<0.000000e+00> : vector<1xf32>
    %203 = vector.multi_reduction <add>, %202, %cst_26 [1] : vector<1x7xf32> to vector<1xf32>
    %204 = vector.shape_cast %203 : vector<1xf32> to vector<1x1xf32>
    %c13_i32 = arith.constant 13 : i32
    %205 = vector.broadcast %c13_i32 : i32 to vector<1x16xi32>
    %206 = arith.cmpi eq, %155, %205 : vector<1x16xi32>
    %207 = vector.shape_cast %204 : vector<1x1xf32> to vector<1x1xf32>
    %208 = vector.broadcast %207 : vector<1x1xf32> to vector<1x16xf32>
    %209 = arith.select %206, %208, %200 : vector<1x16xi1>, vector<1x16xf32>
    %210 = vector.extract_strided_slice %209 {offsets = [0, 7], sizes = [1, 7], strides = [1, 1]} : vector<1x16xf32> to vector<1x7xf32>
    %211 = arith.mulf %210, %153 : vector<1x7xf32>
    %cst_27 = arith.constant dense<0.000000e+00> : vector<1xf32>
    %212 = vector.multi_reduction <add>, %211, %cst_27 [1] : vector<1x7xf32> to vector<1xf32>
    %213 = vector.shape_cast %212 : vector<1xf32> to vector<1x1xf32>
    %c14_i32 = arith.constant 14 : i32
    %214 = vector.broadcast %c14_i32 : i32 to vector<1x16xi32>
    %215 = arith.cmpi eq, %155, %214 : vector<1x16xi32>
    %216 = vector.shape_cast %213 : vector<1x1xf32> to vector<1x1xf32>
    %217 = vector.broadcast %216 : vector<1x1xf32> to vector<1x16xf32>
    %218 = arith.select %215, %217, %209 : vector<1x16xi1>, vector<1x16xf32>
    %219 = vector.extract_strided_slice %218 {offsets = [0, 8], sizes = [1, 7], strides = [1, 1]} : vector<1x16xf32> to vector<1x7xf32>
    %220 = arith.mulf %219, %153 : vector<1x7xf32>
    %cst_28 = arith.constant dense<0.000000e+00> : vector<1xf32>
    %221 = vector.multi_reduction <add>, %220, %cst_28 [1] : vector<1x7xf32> to vector<1xf32>
    %222 = vector.shape_cast %221 : vector<1xf32> to vector<1x1xf32>
    %c15_i32 = arith.constant 15 : i32
    %223 = vector.broadcast %c15_i32 : i32 to vector<1x16xi32>
    %224 = arith.cmpi eq, %155, %223 : vector<1x16xi32>
    %225 = vector.shape_cast %222 : vector<1x1xf32> to vector<1x1xf32>
    %226 = vector.broadcast %225 : vector<1x1xf32> to vector<1x16xf32>
    %227 = arith.select %224, %226, %218 : vector<1x16xi1>, vector<1x16xf32>
    %c0_29 = arith.constant 0 : index
    %c0_30 = arith.constant 0 : index
    %228 = vector.load %arg2[%c0_29, %c0_30] : memref<1x16xf32, #tpu.memory_space<vmem>>, vector<1x16xf32>
    tpu.vector_store %arg2[%c0_29, %c0_30], %227 {strides = array<i32>} : memref<1x16xf32, #tpu.memory_space<vmem>>, vector<1x16xf32>,
    %cst_31 = arith.constant 0.000000e+00 : f32
    %229 = vector.broadcast %cst_31 : f32 to vector<4x8xf32>
    %230 = vector.extract_strided_slice %227 {offsets = [0, 1], sizes = [1, 8], strides = [1, 1]} : vector<1x16xf32> to vector<1x8xf32>
    %231 = vector.extract_strided_slice %149 {offsets = [0, 0], sizes = [4, 1], strides = [1, 1]} : vector<4x7xf32> to vector<4x1xf32>
    %232 = vector.broadcast %231 : vector<4x1xf32> to vector<4x8xf32>
    %233 = vector.broadcast %230 : vector<1x8xf32> to vector<4x8xf32>
    %234 = arith.mulf %232, %233 : vector<4x8xf32>
    %235 = arith.addf %229, %234 : vector<4x8xf32>
    %236 = vector.extract_strided_slice %227 {offsets = [0, 2], sizes = [1, 8], strides = [1, 1]} : vector<1x16xf32> to vector<1x8xf32>
    %237 = vector.extract_strided_slice %149 {offsets = [0, 1], sizes = [4, 1], strides = [1, 1]} : vector<4x7xf32> to vector<4x1xf32>
    %238 = vector.broadcast %237 : vector<4x1xf32> to vector<4x8xf32>
    %239 = vector.broadcast %236 : vector<1x8xf32> to vector<4x8xf32>
    %240 = arith.mulf %238, %239 : vector<4x8xf32>
    %241 = arith.addf %235, %240 : vector<4x8xf32>
    %242 = vector.extract_strided_slice %227 {offsets = [0, 3], sizes = [1, 8], strides = [1, 1]} : vector<1x16xf32> to vector<1x8xf32>
    %243 = vector.extract_strided_slice %149 {offsets = [0, 2], sizes = [4, 1], strides = [1, 1]} : vector<4x7xf32> to vector<4x1xf32>
    %244 = vector.broadcast %243 : vector<4x1xf32> to vector<4x8xf32>
    %245 = vector.broadcast %242 : vector<1x8xf32> to vector<4x8xf32>
    %246 = arith.mulf %244, %245 : vector<4x8xf32>
    %247 = arith.addf %241, %246 : vector<4x8xf32>
    %248 = vector.extract_strided_slice %227 {offsets = [0, 4], sizes = [1, 8], strides = [1, 1]} : vector<1x16xf32> to vector<1x8xf32>
    %249 = vector.extract_strided_slice %149 {offsets = [0, 3], sizes = [4, 1], strides = [1, 1]} : vector<4x7xf32> to vector<4x1xf32>
    %250 = vector.broadcast %249 : vector<4x1xf32> to vector<4x8xf32>
    %251 = vector.broadcast %248 : vector<1x8xf32> to vector<4x8xf32>
    %252 = arith.mulf %250, %251 : vector<4x8xf32>
    %253 = arith.addf %247, %252 : vector<4x8xf32>
    %254 = vector.extract_strided_slice %227 {offsets = [0, 5], sizes = [1, 8], strides = [1, 1]} : vector<1x16xf32> to vector<1x8xf32>
    %255 = vector.extract_strided_slice %149 {offsets = [0, 4], sizes = [4, 1], strides = [1, 1]} : vector<4x7xf32> to vector<4x1xf32>
    %256 = vector.broadcast %255 : vector<4x1xf32> to vector<4x8xf32>
    %257 = vector.broadcast %254 : vector<1x8xf32> to vector<4x8xf32>
    %258 = arith.mulf %256, %257 : vector<4x8xf32>
    %259 = arith.addf %253, %258 : vector<4x8xf32>
    %260 = vector.extract_strided_slice %227 {offsets = [0, 6], sizes = [1, 8], strides = [1, 1]} : vector<1x16xf32> to vector<1x8xf32>
    %261 = vector.extract_strided_slice %149 {offsets = [0, 5], sizes = [4, 1], strides = [1, 1]} : vector<4x7xf32> to vector<4x1xf32>
    %262 = vector.broadcast %261 : vector<4x1xf32> to vector<4x8xf32>
    %263 = vector.broadcast %260 : vector<1x8xf32> to vector<4x8xf32>
    %264 = arith.mulf %262, %263 : vector<4x8xf32>
    %265 = arith.addf %259, %264 : vector<4x8xf32>
    %266 = vector.extract_strided_slice %227 {offsets = [0, 7], sizes = [1, 8], strides = [1, 1]} : vector<1x16xf32> to vector<1x8xf32>
    %267 = vector.extract_strided_slice %149 {offsets = [0, 6], sizes = [4, 1], strides = [1, 1]} : vector<4x7xf32> to vector<4x1xf32>
    %268 = vector.broadcast %267 : vector<4x1xf32> to vector<4x8xf32>
    %269 = vector.broadcast %266 : vector<1x8xf32> to vector<4x8xf32>
    %270 = arith.mulf %268, %269 : vector<4x8xf32>
    %271 = arith.addf %265, %270 : vector<4x8xf32>
    %c0_32 = arith.constant 0 : index
    %c0_33 = arith.constant 0 : index
    %272 = vector.load %arg3[%c0_32, %c0_33] : memref<4x8xf32, #tpu.memory_space<vmem>>, vector<4x8xf32>
    tpu.vector_store %arg3[%c0_32, %c0_33], %271 {strides = array<i32>} : memref<4x8xf32, #tpu.memory_space<vmem>>, vector<4x8xf32>,
    return
  }
}

</mosaic_0001>

<llo_original>
// kernel: linear_sti_forward.1
$region0: #{linear_sti_forward.1}
  #allocation0 [shape = 'u32[]', space=smem, size = 0x4, offset = 0x4, fixed_abs, tag = 'smem constant byte address 0x4 - core index']
  #allocation1 [shape = 'u32[144,128]{1,0:T(1,128)}', space=vmem, size = 0x12000, scoped, tag = 'internal scratch']
  %s0 = inlined_call_operand.hbm [shape: f32[4,8], index: 0, kind: input, shape index: {}]
  %s1 = inlined_call_operand.vmem [shape: f32[1,16], index: 1, kind: input, shape index: {}]
  %s2 = inlined_call_operand.hbm [shape: f32[1,16], index: 2, kind: output, shape index: {0}]
  %s3 = inlined_call_operand.hbm [shape: f32[4,8], index: 3, kind: output, shape index: {1}]
  %4 = xla_tuple %s2, %s3
  %s5 = sld [smem:[#allocation0]]
  $region30: #{linear_sti_forward.1} parent=0
    _
  %s7 = ssub.s32 1, %s5
  %s8 = scalar_select 0, %s7, %s5
  $region1: #{linear_sti_forward.1} parent=0
    #allocation2 [shape = 'u8[2048]{0}', space=vmem, size = 0x800, scoped, tag = 'input window, operand 0, single buffered']
    #allocation3 [shape = 's32[1]{0}', space=sflag, size = 0x4, scoped, tag = 'scoped memory for linear_sti_forward.1']
    #allocation4 [shape = 's32[1]{0}', space=sflag, size = 0x4, scoped, tag = 'scoped memory for linear_sti_forward.1']
    #allocation5 [shape = 'u8[512]{0}', space=vmem, size = 0x400, scoped, tag = 'output window, operand 0, single buffered']
    #allocation6 [shape = 'u8[2048]{0}', space=vmem, size = 0x800, scoped, tag = 'output window, operand 1, single buffered']
    #allocation7 [shape = 's32[1]{0}', space=sflag, size = 0x4, scoped, tag = 'scoped memory for linear_sti_forward.1']
    %9 = vsyncpa [#allocation3], 0
    %10 = vsyncpa [#allocation4], 0
    %11 = vsyncpa [#allocation7], 0
    // Predicated region
    $region2: #{linear_sti_forward.1} parent=1 // pred_check
      _
    $region3: #{linear_sti_forward.1} parent=1 // pred_check_branch
      %13 = sbr.rel (0) target = $region5
    $region4: #{linear_sti_forward.1} parent=1 // pred_region
      %s15 = ssub.s32 64, 64
      %16 = vsyncadd [#allocation3], %s15
      %s18 = sshll.u32 [#allocation2], 4
      %s19 = int_to_ptr.vmem [resolvable:$true] %s18
      %21 = dma.hbm_to_vmem [thread:$0]  %s0, 64, %s19, [#allocation3]
    $region5: #{linear_sti_forward.1} parent=1 // pred_fallthru
      _
    // Predicated region
    $region6: #{linear_sti_forward.1} parent=1 // pred_check
      _
    $region7: #{linear_sti_forward.1} parent=1 // pred_check_branch
      %23 = sbr.rel (0) target = $region9
    $region8: #{linear_sti_forward.1} parent=1 // pred_region
      _
    $region9: #{linear_sti_forward.1} parent=1 // pred_fallthru
      _
    // Predicated region
    $region10: #{linear_sti_forward.1} parent=1 // pred_check
      _
    $region11: #{linear_sti_forward.1} parent=1 // pred_check_branch
      %25 = sbr.rel (0) target = $region13
    $region12: #{linear_sti_forward.1} parent=1 // pred_region
      %26 = dma.done [#allocation3], 64
    $region13: #{linear_sti_forward.1} parent=1 // pred_fallthru
      _
    %v27 = vld [vmem:[#allocation2] sm:$0xf]
    %v28 = vlaneseq
    %v29 = vshrl.u32 %v28, 7
    %v30 = vlaneseq
    %v31 = vand.u32 %v30, 127
    %v32 = vlaneseq
    %v33 = vshrl.u32 %v32, 7
    %v34 = vsub.s32 0, %v33
    %v35 = vrot.slane %v27, %v34
    %v36 = vmul.f32 %v27, %v35
    %vm37 = vcmask 52224
    %v38 = vsel %vm37, %v36, 0.0
    %39 = vadd.xlane.f32.xlu0 %v38
    %v40 = vpop.xlane.xlu0 %39
    %vm41 = vcmp.eq.s32.totalorder %v31, 0
    %v42 = vsel %vm41, %v40, 0.0
    %v43 = vlaneseq
    %v44 = vshrl.u32 %v43, 7
    %v45 = vsub.s32 1, %v44
    %v46 = vrot.slane %v27, %v45
    %v47 = vmul.f32 %v27, %v46
    %v48 = vsel %vm37, %v47, 0.0
    %49 = vadd.xlane.f32.xlu0 %v48
    %v50 = vpop.xlane.xlu0 %49
    %vm51 = vcmp.eq.s32.totalorder %v31, 1
    %v52 = vsel %vm51, %v50, %v42
    %v53 = vlaneseq
    %v54 = vshrl.u32 %v53, 7
    %v55 = vsub.s32 2, %v54
    %v56 = vrot.slane %v27, %v55
    %v57 = vmul.f32 %v27, %v56
    %v58 = vsel %vm37, %v57, 0.0
    %59 = vadd.xlane.f32.xlu0 %v58
    %v60 = vpop.xlane.xlu0 %59
    %vm61 = vcmp.eq.s32.totalorder %v31, 2
    %v62 = vsel %vm61, %v60, %v52
    %v63 = vlaneseq
    %v64 = vshrl.u32 %v63, 7
    %v65 = vsub.s32 3, %v64
    %v66 = vrot.slane %v27, %v65
    %v67 = vmul.f32 %v27, %v66
    %v68 = vsel %vm37, %v67, 0.0
    %69 = vadd.xlane.f32.xlu0 %v68
    %v70 = vpop.xlane.xlu0 %69
    %vm71 = vcmp.eq.s32.totalorder %v31, 3
    %v72 = vsel %vm71, %v70, %v62
    %vm73 = vcmp.eq.s32.totalorder %v29, %v31
    %v74 = vadd.f32 %v72, 1.0
    %v75 = vsel %vm73, %v74, %v72
    %v76 = vrcp.pop %v75
    %v77 = vmul.f32 1.0, %v76
    %79 = vset.pattern.permute.xlu0 0
    %80 = vperm.xlu0 %79, %v77
    %v81 = vpop.permute.xlu0 %80
    %v83 = vmul.f32 %v75, %v81
    %v84 = vmul.f32 %v27, %v81
    %86 = vset.pattern.permute.xlu0 0
    %87 = vperm.xlu0 %86, %v75
    %v88 = vpop.permute.xlu0 %87
    %v90 = vlaneseq
    %v91 = vshrl.u32 %v90, 7
    %v92 = vsub.s32 0, %v91
    %v93 = vrot.slane %v83, %v92
    %v94 = vmul.f32 %v88, %v93
    %v95 = vsub.f32 %v75, %v94
    %v96 = vlaneseq
    %v97 = vshrl.u32 %v96, 7
    %v98 = vsub.s32 0, %v97
    %v99 = vrot.slane %v84, %v98
    %v100 = vmul.f32 %v88, %v99
    %v101 = vsub.f32 %v27, %v100
    %vm102 = vcmp.eq.s32.totalorder %v29, 0
    %v103 = vsel %vm102, %v93, %v95
    %v104 = vsel %vm102, %v99, %v101
    %v105 = vrcp.pop %v103
    %v106 = vmul.f32 1.0, %v105
    %108 = vset.pattern.permute.xlu0 1
    %109 = vperm.xlu0 %108, %v106
    %v110 = vpop.permute.xlu0 %109
    %v112 = vmul.f32 %v103, %v110
    %v113 = vmul.f32 %v104, %v110
    %115 = vset.pattern.permute.xlu0 1
    %116 = vperm.xlu0 %115, %v103
    %v117 = vpop.permute.xlu0 %116
    %v119 = vlaneseq
    %v120 = vshrl.u32 %v119, 7
    %v121 = vsub.s32 1, %v120
    %v122 = vrot.slane %v112, %v121
    %v123 = vmul.f32 %v117, %v122
    %v124 = vsub.f32 %v103, %v123
    %v125 = vlaneseq
    %v126 = vshrl.u32 %v125, 7
    %v127 = vsub.s32 1, %v126
    %v128 = vrot.slane %v113, %v127
    %v129 = vmul.f32 %v117, %v128
    %v130 = vsub.f32 %v104, %v129
    %vm131 = vcmp.eq.s32.totalorder %v29, 1
    %v132 = vsel %vm131, %v122, %v124
    %v133 = vsel %vm131, %v128, %v130
    %v134 = vrcp.pop %v132
    %v135 = vmul.f32 1.0, %v134
    %137 = vset.pattern.permute.xlu0 2
    %138 = vperm.xlu0 %137, %v135
    %v139 = vpop.permute.xlu0 %138
    %v141 = vmul.f32 %v132, %v139
    %v142 = vmul.f32 %v133, %v139
    %144 = vset.pattern.permute.xlu0 2
    %145 = vperm.xlu0 %144, %v132
    %v146 = vpop.permute.xlu0 %145
    %v148 = vlaneseq
    %v149 = vshrl.u32 %v148, 7
    %v150 = vsub.s32 2, %v149
    %v151 = vrot.slane %v141, %v150
    %v152 = vmul.f32 %v146, %v151
    %v153 = vsub.f32 %v132, %v152
    %v154 = vlaneseq
    %v155 = vshrl.u32 %v154, 7
    %v156 = vsub.s32 2, %v155
    %v157 = vrot.slane %v142, %v156
    %v158 = vmul.f32 %v146, %v157
    %v159 = vsub.f32 %v133, %v158
    %vm160 = vcmp.eq.s32.totalorder %v29, 2
    %v161 = vsel %vm160, %v151, %v153
    %v162 = vsel %vm160, %v157, %v159
    %v163 = vrcp.pop %v161
    %v164 = vmul.f32 1.0, %v163
    %166 = vset.pattern.permute.xlu0 3
    %167 = vperm.xlu0 %166, %v164
    %v168 = vpop.permute.xlu0 %167
    %v170 = vmul.f32 %v162, %v168
    %172 = vset.pattern.permute.xlu0 3
    %173 = vperm.xlu0 %172, %v161
    %v174 = vpop.permute.xlu0 %173
    %v176 = vlaneseq
    %v177 = vshrl.u32 %v176, 7
    %v178 = vsub.s32 3, %v177
    %v179 = vrot.slane %v170, %v178
    %v180 = vmul.f32 %v174, %v179
    %v181 = vsub.f32 %v162, %v180
    %vm182 = vcmp.eq.s32.totalorder %v29, 3
    %v183 = vsel %vm182, %v179, %v181
    %185 = vset.pattern.permute.xlu0 7
    %186 = vperm.xlu0 %185, %v27
    %v187 = vpop.permute.xlu0 %186
    %v189 = vmul.f32 %v183, %v187
    %v190 = vsel %vm37, %v189, 0.0
    %v191 = vrot.slane %v190, 4
    %v192 = vadd.f32 %v190, %v191
    %v193 = vrot.slane %v192, 2
    %v194 = vadd.f32 %v192, %v193
    %v195 = vrot.slane %v194, 1
    %v196 = vadd.f32 %v194, %v195
    %v197 = vld [vmem:[%s1] sm:$0x1]
    %v200 = vunpack.c.l.s4 1966171168
    %v201 = vunpack.c.0.s8 %v200
    %v202 = vlaneseq
    %v203 = vshrl.u32 %v202, 7
    %v204 = vsub.s32 %v201, %v203
    %v205 = vrot.slane %v196, %v204
    %v207 = vunpack.c.l.s4 1966171168
    %v208 = vunpack.c.0.s8 %v207
    %v209 = vlaneseq
    %v210 = vshrl.u32 %v209, 7
    %v211 = vsub.s32 %v208, %v210
    %v212 = vrot.slane %v205, %v211
    %213 = vrot.lane.b32.xlu0 %v212, 1
    %v214 = vpop.permute.xlu0 %213
    %v216 = vmul.f32 %v197, %v214
    %v218 = vlaneseq
    %v219 = vshrl.u32 %v218, 7
    %v220 = vsub.s32 0, %v219
    %v221 = vrot.slane %v216, %v220
    %222 = vrot.lane.b32.xlu0 %v221, 127
    %v223 = vpop.permute.xlu0 %222
    %vm225 = vcmask 49152
    %v226 = vsel %vm225, %v223, 0.0
    %227 = vadd.xlane.f32.xlu0 %v226
    %v228 = vpop.xlane.xlu0 %227
    %vm229 = vcmp.eq.s32.totalorder %v31, 8
    %v230 = vsel %vm229, %v228, %v197
    %231 = vrot.lane.b32.xlu0 %v196, 2
    %v232 = vpop.permute.xlu0 %231
    %v234 = vmul.f32 %v230, %v232
    %236 = vrot.lane.b32.xlu0 %v234, 126
    %v237 = vpop.permute.xlu0 %236
    %v239 = vsel %vm225, %v237, 0.0
    %240 = vadd.xlane.f32.xlu0 %v239
    %v241 = vpop.xlane.xlu0 %240
    %vm242 = vcmp.eq.s32.totalorder %v31, 9
    %v243 = vsel %vm242, %v241, %v230
    %244 = vrot.lane.b32.xlu0 %v196, 3
    %v245 = vpop.permute.xlu0 %244
    %v247 = vmul.f32 %v243, %v245
    %249 = vrot.lane.b32.xlu0 %v247, 125
    %v250 = vpop.permute.xlu0 %249
    %v252 = vsel %vm225, %v250, 0.0
    %253 = vadd.xlane.f32.xlu0 %v252
    %v254 = vpop.xlane.xlu0 %253
    %vm255 = vcmp.eq.s32.totalorder %v31, 10
    %v256 = vsel %vm255, %v254, %v243
    %257 = vrot.lane.b32.xlu0 %v196, 4
    %v258 = vpop.permute.xlu0 %257
    %v260 = vmul.f32 %v256, %v258
    %262 = vrot.lane.b32.xlu0 %v260, 124
    %v263 = vpop.permute.xlu0 %262
    %v265 = vsel %vm225, %v263, 0.0
    %266 = vadd.xlane.f32.xlu0 %v265
    %v267 = vpop.xlane.xlu0 %266
    %vm268 = vcmp.eq.s32.totalorder %v31, 11
    %v269 = vsel %vm268, %v267, %v256
    %270 = vrot.lane.b32.xlu0 %v196, 5
    %v271 = vpop.permute.xlu0 %270
    %v273 = vmul.f32 %v269, %v271
    %275 = vrot.lane.b32.xlu0 %v273, 123
    %v276 = vpop.permute.xlu0 %275
    %v278 = vsel %vm225, %v276, 0.0
    %279 = vadd.xlane.f32.xlu0 %v278
    %v280 = vpop.xlane.xlu0 %279
    %vm281 = vcmp.eq.s32.totalorder %v31, 12
    %v282 = vsel %vm281, %v280, %v269
    %283 = vrot.lane.b32.xlu0 %v196, 6
    %v284 = vpop.permute.xlu0 %283
    %v286 = vmul.f32 %v282, %v284
    %288 = vrot.lane.b32.xlu0 %v286, 122
    %v289 = vpop.permute.xlu0 %288
    %v291 = vsel %vm225, %v289, 0.0
    %292 = vadd.xlane.f32.xlu0 %v291
    %v293 = vpop.xlane.xlu0 %292
    %vm294 = vcmp.eq.s32.totalorder %v31, 13
    %v295 = vsel %vm294, %v293, %v282
    %296 = vrot.lane.b32.xlu0 %v196, 7
    %v297 = vpop.permute.xlu0 %296
    %v299 = vmul.f32 %v295, %v297
    %301 = vrot.lane.b32.xlu0 %v299, 121
    %v302 = vpop.permute.xlu0 %301
    %v304 = vsel %vm225, %v302, 0.0
    %305 = vadd.xlane.f32.xlu0 %v304
    %v306 = vpop.xlane.xlu0 %305
    %vm307 = vcmp.eq.s32.totalorder %v31, 14
    %v308 = vsel %vm307, %v306, %v295
    %309 = vrot.lane.b32.xlu0 %v196, 8
    %v310 = vpop.permute.xlu0 %309
    %v312 = vmul.f32 %v308, %v310
    %314 = vrot.lane.b32.xlu0 %v312, 120
    %v315 = vpop.permute.xlu0 %314
    %v317 = vsel %vm225, %v315, 0.0
    %318 = vadd.xlane.f32.xlu0 %v317
    %v319 = vpop.xlane.xlu0 %318
    %vm320 = vcmp.eq.s32.totalorder %v31, 15
    %v321 = vsel %vm320, %v319, %v308
    %vm322 = vcmask 122880
    %323 = vst.msk [vmem:[#allocation5] sm:$0x1] %vm322, %v321
    %325 = vset.pattern.permute.xlu0 0
    %326 = vperm.xlu0 %325, %v183
    %v327 = vpop.permute.xlu0 %326
    %v329 = vlaneseq
    %v330 = vshrl.u32 %v329, 7
    %v331 = vsub.s32 0, %v330
    %v332 = vrot.slane %v321, %v331
    %v333 = vmul.f32 %v327, %v332
    %v334 = vadd.f32 %v333, 0.0
    %335 = vset.pattern.permute.xlu0 1
    %336 = vperm.xlu0 %335, %v183
    %v337 = vpop.permute.xlu0 %336
    %v339 = vmul.f32 %v337, %v332
    %341 = vrot.lane.b32.xlu0 %v339, 127
    %v342 = vpop.permute.xlu0 %341
    %v344 = vadd.f32 %v334, %v342
    %345 = vset.pattern.permute.xlu0 2
    %346 = vperm.xlu0 %345, %v183
    %v347 = vpop.permute.xlu0 %346
    %v349 = vmul.f32 %v347, %v332
    %351 = vrot.lane.b32.xlu0 %v349, 126
    %v352 = vpop.permute.xlu0 %351
    %v354 = vadd.f32 %v344, %v352
    %355 = vset.pattern.permute.xlu0 3
    %356 = vperm.xlu0 %355, %v183
    %v357 = vpop.permute.xlu0 %356
    %v359 = vmul.f32 %v357, %v332
    %361 = vrot.lane.b32.xlu0 %v359, 125
    %v362 = vpop.permute.xlu0 %361
    %v364 = vadd.f32 %v354, %v362
    %365 = vset.pattern.permute.xlu0 4
    %366 = vperm.xlu0 %365, %v183
    %v367 = vpop.permute.xlu0 %366
    %v369 = vmul.f32 %v367, %v332
    %371 = vrot.lane.b32.xlu0 %v369, 124
    %v372 = vpop.permute.xlu0 %371
    %v374 = vadd.f32 %v364, %v372
    %375 = vset.pattern.permute.xlu0 5
    %376 = vperm.xlu0 %375, %v183
    %v377 = vpop.permute.xlu0 %376
    %v379 = vmul.f32 %v377, %v332
    %381 = vrot.lane.b32.xlu0 %v379, 123
    %v382 = vpop.permute.xlu0 %381
    %v384 = vadd.f32 %v374, %v382
    %385 = vset.pattern.permute.xlu0 6
    %386 = vperm.xlu0 %385, %v183
    %v387 = vpop.permute.xlu0 %386
    %v389 = vmul.f32 %v387, %v332
    %391 = vrot.lane.b32.xlu0 %v389, 122
    %v392 = vpop.permute.xlu0 %391
    %v394 = vadd.f32 %v384, %v392
    %396 = vrot.lane.b32.xlu0 %v394, 127
    %v397 = vpop.permute.xlu0 %396
    %vm399 = vcmask 60416
    %400 = vst.msk [vmem:[#allocation6] sm:$0xf] %vm399, %v397
    // Predicated region
    $region14: #{linear_sti_forward.1} parent=1 // pred_check
      _
    $region15: #{linear_sti_forward.1} parent=1 // pred_check_branch
      %402 = sbr.rel (0) target = $region17
    $region16: #{linear_sti_forward.1} parent=1 // pred_region
      %s404 = ssub.s32 16, 16
      %405 = vsyncadd [#allocation4], %s404
      %s407 = sshll.u32 [#allocation5], 4
      %s408 = int_to_ptr.vmem [resolvable:$true] %s407
      %410 = dma.vmem_to_hbm [thread:$0]  %s408, 16, %s2, [#allocation4]
    $region17: #{linear_sti_forward.1} parent=1 // pred_fallthru
      _
    // Predicated region
    $region18: #{linear_sti_forward.1} parent=1 // pred_check
      _
    $region19: #{linear_sti_forward.1} parent=1 // pred_check_branch
      %412 = sbr.rel (0) target = $region21
    $region20: #{linear_sti_forward.1} parent=1 // pred_region
      %s414 = ssub.s32 64, 64
      %415 = vsyncadd [#allocation7], %s414
      %s417 = sshll.u32 [#allocation6], 4
      %s418 = int_to_ptr.vmem [resolvable:$true] %s417
      %420 = dma.vmem_to_hbm [thread:$0]  %s418, 64, %s3, [#allocation7]
    $region21: #{linear_sti_forward.1} parent=1 // pred_fallthru
      _
    // Predicated region
    $region22: #{linear_sti_forward.1} parent=1 // pred_check
      _
    $region23: #{linear_sti_forward.1} parent=1 // pred_check_branch
      %422 = sbr.rel (0) target = $region25
    $region24: #{linear_sti_forward.1} parent=1 // pred_region
      %423 = dma.done [#allocation4], 16
    $region25: #{linear_sti_forward.1} parent=1 // pred_fallthru
      _
    // Predicated region
    $region26: #{linear_sti_forward.1} parent=1 // pred_check
      _
    $region27: #{linear_sti_forward.1} parent=1 // pred_check_branch
      %425 = sbr.rel (0) target = $region29
    $region28: #{linear_sti_forward.1} parent=1 // pred_region
      %426 = dma.done [#allocation7], 64
    $region29: #{linear_sti_forward.1} parent=1 // pred_fallthru
      _
    %427 = vsyncpa [#allocation3], 1
    %428 = vsyncpa [#allocation4], 1
    %429 = vsyncpa [#allocation7], 1

</llo_original>
